<compile_context>
chip_gen: v6e
topology: v6e:2x2x1
jax: 0.10.0
libtpu: 0.0.40
codegen_flags: <defaults>
</compile_context>

<pallas_src>
import jax
import jax.numpy as jnp
from jax.experimental import pallas as pl
from jax.experimental.pallas import tpu as pltpu


def actor_kernel(x_ref,
                 w1_ref, b1_ref,
                 w2_ref, b2_ref,
                 w3_ref, b3_ref,
                 w4_ref, b4_ref,
                 o_ref):
    # Whole MLP hot path: 4 MXU matmuls (f32 accumulate) + f32 bias + f32 tanh.
    # Matmul operand dtype follows the (pre-cast) weight dtype; when it's f32
    # the astype calls are no-ops.
    cd = w1_ref.dtype
    x = x_ref[...].astype(cd)

    h = jnp.tanh(jnp.dot(x, w1_ref[...], preferred_element_type=jnp.float32) + b1_ref[...])
    h = jnp.tanh(jnp.dot(h.astype(cd), w2_ref[...], preferred_element_type=jnp.float32) + b2_ref[...])
    h = jnp.tanh(jnp.dot(h.astype(cd), w3_ref[...], preferred_element_type=jnp.float32) + b3_ref[...])
    h = jnp.tanh(jnp.dot(h.astype(cd), w4_ref[...], preferred_element_type=jnp.float32) + b4_ref[...])

    o_ref[...] = h.astype(o_ref.dtype)


def _round_up(x, m):
    return (x + m - 1) // m * m


def _cdiv(a, b):
    return (a + b - 1) // b


def _pad_to(a, shape):
    pads = [(0, t - s) for s, t in zip(a.shape, shape)]
    if all(p == (0, 0) for p in pads):
        return a
    return jnp.pad(a, pads)


def prepare_actor_params(params, *, compute_dtype=jnp.float32):
    """One-time (outside the per-call path) hidden-dim padding + optional weight cast.

    Input / output feature dims stay UNPADDED; only the hidden dim is padded to a
    multiple of 128.  Zero padding is exact: padded weight rows/cols and biases are
    zero and tanh(0) == 0, so padded hidden lanes stay identically zero.
    Biases stay f32 (they are added to the f32 MXU accumulator)."""
    in_size, hid = params["w1"].shape
    out_size = params["w4"].shape[1]
    hid_p = _round_up(hid, 128)
    return {
        "w1": _pad_to(params["w1"], (in_size, hid_p)).astype(compute_dtype),
        "b1": _pad_to(params["b1"], (1, hid_p)).astype(jnp.float32),
        "w2": _pad_to(params["w2"], (hid_p, hid_p)).astype(compute_dtype),
        "b2": _pad_to(params["b2"], (1, hid_p)).astype(jnp.float32),
        "w3": _pad_to(params["w3"], (hid_p, hid_p)).astype(compute_dtype),
        "b3": _pad_to(params["b3"], (1, hid_p)).astype(jnp.float32),
        "w4": _pad_to(params["w4"], (hid_p, out_size)).astype(compute_dtype),
        "b4": params["b4"].astype(jnp.float32),
    }


def actor_forward(s, prepared, *, batch_tile=1024, min_split_rows=256):
    """s: [B, input_size] float32.  prepared: output of prepare_actor_params."""
    B, in_size = s.shape
    assert prepared["w1"].shape[0] == in_size
    out_size = prepared["w4"].shape[1]

    # Balanced batch tiles: pick n_tiles first, then TB = cdiv(B, n_tiles) rounded
    # up to a multiple of 8.  Keep >= 2 tiles for moderately large B so the
    # "parallel" grid axis can be sharded across both v7x TensorCores.
    n_tiles = max(1, _cdiv(B, batch_tile))
    if n_tiles < 2 and B >= min_split_rows:
        n_tiles = 2
    TB = _round_up(_cdiv(B, n_tiles), 8)
    B_p = n_tiles * TB

    s = s.astype(jnp.float32)
    s_p = s if B_p == B else jnp.pad(s, ((0, B_p - B), (0, 0)))

    # Weights/biases: full blocks with constant index_map -> stay VMEM-resident
    # across all grid steps.
    const = lambda a: pl.BlockSpec(a.shape, lambda i: (0,) * a.ndim)
    p = prepared

    out = pl.pallas_call(
        actor_kernel,
        out_shape=jax.ShapeDtypeStruct((B_p, out_size), jnp.float32),
        grid_spec=pltpu.PrefetchScalarGridSpec(
            num_scalar_prefetch=0,
            grid=(n_tiles,),
            in_specs=[
                # Unpadded feature dim: last dim equals the full array dim.
                pl.BlockSpec((TB, in_size), lambda i: (i, 0)),
                const(p["w1"]), const(p["b1"]),
                const(p["w2"]), const(p["b2"]),
                const(p["w3"]), const(p["b3"]),
                const(p["w4"]), const(p["b4"]),
            ],
            # Unpadded output dim: last dim equals the full array dim.
            out_specs=pl.BlockSpec((TB, out_size), lambda i: (i, 0)),
        ),
        compiler_params=pltpu.CompilerParams(
            dimension_semantics=("parallel",),
        ),
    )(s_p, p["w1"], p["b1"], p["w2"], p["b2"], p["w3"], p["b3"], p["w4"], p["b4"])

    return out if B_p == B else out[:B]


def init_actor_params(key, input_size, hidden_size, output_size, large_weight=0.01):
    """Mirrors Actor.__init__ (hidden_layer == 3): N(0, 0.01) weights, zero biases.
    Weights are stored transposed ([in, out]) relative to PyTorch's [out, in]."""
    k1, k2, k3, k4 = jax.random.split(key, 4)
    return {
        "w1": large_weight * jax.random.normal(k1, (input_size, hidden_size), jnp.float32),
        "b1": jnp.zeros((1, hidden_size), jnp.float32),
        "w2": large_weight * jax.random.normal(k2, (hidden_size, hidden_size), jnp.float32),
        "b2": jnp.zeros((1, hidden_size), jnp.float32),
        "w3": large_weight * jax.random.normal(k3, (hidden_size, hidden_size), jnp.float32),
        "b3": jnp.zeros((1, hidden_size), jnp.float32),
        "w4": large_weight * jax.random.normal(k4, (hidden_size, output_size), jnp.float32),
        "b4": jnp.zeros((1, output_size), jnp.float32),
    }


def actor_reference(s, p):
    h = jnp.tanh(s @ p["w1"] + p["b1"])
    h = jnp.tanh(h @ p["w2"] + p["b2"])
    h = jnp.tanh(h @ p["w3"] + p["b3"])
    h = jnp.tanh(h @ p["w4"] + p["b4"])
    return h


if __name__ == "__main__":
    key = jax.random.PRNGKey(0)
    k_param, k_in, k_in2 = jax.random.split(key, 3)

    batch = 2
    input_size = 16
    hidden_size = 32
    output_size = 8

    params = init_actor_params(k_param, input_size, hidden_size, output_size)
    prep_f32 = prepare_actor_params(params)  # exact f32 path (one-time weight prep)

    # Small batch, single tile.
    s = jax.random.normal(k_in, (batch, input_size), jnp.float32)
    out = jax.block_until_ready(actor_forward(s, prep_f32))
    ref = actor_reference(s, params)
    assert out.shape == (batch, output_size)
    assert jnp.allclose(out, ref, atol=1e-5, rtol=1e-5)

    # Multi-tile pipelined path: B=1120 -> 2 balanced tiles of 560 rows,
    # zero batch-padding waste, both v7x TensorCores engaged.
    big_batch = 1024 + 96
    s_big = jax.random.normal(k_in2, (big_batch, input_size), jnp.float32)
    out_big = jax.block_until_ready(actor_forward(s_big, prep_f32))
    ref_big = actor_reference(s_big, params)
    assert out_big.shape == (big_batch, output_size)
    assert jnp.allclose(out_big, ref_big, atol=1e-5, rtol=1e-5)

    # Optional bf16-matmul path (v5e/v6e/v7x MXU lever; deliberate numerics
    # tradeoff vs the f32 reference).
    prep_bf16 = prepare_actor_params(params, compute_dtype=jnp.bfloat16)
    out_bf16 = jax.block_until_ready(actor_forward(s_big, prep_bf16))
    assert out_bf16.shape == (big_batch, output_size)
    assert jnp.allclose(out_bf16, ref_big, atol=1e-3, rtol=1e-2)

    print("KERNEL_OK")
</pallas_src>

<mosaic_0001>
module attributes {stable_mosaic.version = 11 : i64} {
  func.func @actor_kernel(%arg0: i32, %arg1: memref<8x16xf32, #tpu.memory_space<vmem>>, %arg2: memref<16x128xf32, #tpu.memory_space<vmem>>, %arg3: memref<1x128xf32, #tpu.memory_space<vmem>>, %arg4: memref<128x128xf32, #tpu.memory_space<vmem>>, %arg5: memref<1x128xf32, #tpu.memory_space<vmem>>, %arg6: memref<128x128xf32, #tpu.memory_space<vmem>>, %arg7: memref<1x128xf32, #tpu.memory_space<vmem>>, %arg8: memref<128x8xf32, #tpu.memory_space<vmem>>, %arg9: memref<1x8xf32, #tpu.memory_space<vmem>>, %arg10: memref<8x8xf32, #tpu.memory_space<vmem>>) attributes {dimension_semantics = [#tpu.dimension_semantics<parallel>], iteration_bounds = array<i64: 1>, scalar_prefetch = 0 : i64, scratch_operands = 0 : i64, tpu.core_type = #tpu.core_type<tc>, window_params = [{transform_indices = @transform_0, window_bounds = array<i64: 8, 16>}, {pipeline_mode = #tpu.pipeline_mode<synchronous>, transform_indices = @transform_1, window_bounds = array<i64: 16, 128>}, {pipeline_mode = #tpu.pipeline_mode<synchronous>, transform_indices = @transform_2, window_bounds = array<i64: 1, 128>}, {pipeline_mode = #tpu.pipeline_mode<synchronous>, transform_indices = @transform_3, window_bounds = array<i64: 128, 128>}, {pipeline_mode = #tpu.pipeline_mode<synchronous>, transform_indices = @transform_4, window_bounds = array<i64: 1, 128>}, {pipeline_mode = #tpu.pipeline_mode<synchronous>, transform_indices = @transform_5, window_bounds = array<i64: 128, 128>}, {pipeline_mode = #tpu.pipeline_mode<synchronous>, transform_indices = @transform_6, window_bounds = array<i64: 1, 128>}, {pipeline_mode = #tpu.pipeline_mode<synchronous>, transform_indices = @transform_7, window_bounds = array<i64: 128, 8>}, {pipeline_mode = #tpu.pipeline_mode<synchronous>, transform_indices = @transform_8, window_bounds = array<i64: 1, 8>}, {transform_indices = @transform_9, window_bounds = array<i64: 8, 8>}]} {
    %c0 = arith.constant 0 : index
    %c0_0 = arith.constant 0 : index
    %0 = vector.load %arg1[%c0, %c0_0] : memref<8x16xf32, #tpu.memory_space<vmem>>, vector<8x16xf32>
    %c0_1 = arith.constant 0 : index
    %c0_2 = arith.constant 0 : index
    %1 = vector.load %arg2[%c0_1, %c0_2] : memref<16x128xf32, #tpu.memory_space<vmem>>, vector<16x128xf32>
    %cst = arith.constant dense<0.000000e+00> : vector<8x128xf32>
    %2 = tpu.matmul %0, %1, %cst {dimension_numbers = #tpu.dot_dimension_numbers<[1], [0], [0], [1], [0, 0, 1, 1], [], []>} : vector<8x16xf32>, vector<16x128xf32>, vector<8x128xf32> -> vector<8x128xf32>
    %c0_3 = arith.constant 0 : index
    %c0_4 = arith.constant 0 : index
    %3 = vector.load %arg3[%c0_3, %c0_4] : memref<1x128xf32, #tpu.memory_space<vmem>>, vector<1x128xf32>
    %4 = vector.broadcast %3 : vector<1x128xf32> to vector<8x128xf32>
    %5 = arith.addf %2, %4 : vector<8x128xf32>
    %6 = math.tanh %5 : vector<8x128xf32>
    %c0_5 = arith.constant 0 : index
    %c0_6 = arith.constant 0 : index
    %7 = vector.load %arg4[%c0_5, %c0_6] : memref<128x128xf32, #tpu.memory_space<vmem>>, vector<128x128xf32>
    %cst_7 = arith.constant dense<0.000000e+00> : vector<8x128xf32>
    %8 = tpu.matmul %6, %7, %cst_7 {dimension_numbers = #tpu.dot_dimension_numbers<[1], [0], [0], [1], [0, 0, 1, 1], [], []>} : vector<8x128xf32>, vector<128x128xf32>, vector<8x128xf32> -> vector<8x128xf32>
    %c0_8 = arith.constant 0 : index
    %c0_9 = arith.constant 0 : index
    %9 = vector.load %arg5[%c0_8, %c0_9] : memref<1x128xf32, #tpu.memory_space<vmem>>, vector<1x128xf32>
    %10 = vector.broadcast %9 : vector<1x128xf32> to vector<8x128xf32>
    %11 = arith.addf %8, %10 : vector<8x128xf32>
    %12 = math.tanh %11 : vector<8x128xf32>
    %c0_10 = arith.constant 0 : index
    %c0_11 = arith.constant 0 : index
    %13 = vector.load %arg6[%c0_10, %c0_11] : memref<128x128xf32, #tpu.memory_space<vmem>>, vector<128x128xf32>
    %cst_12 = arith.constant dense<0.000000e+00> : vector<8x128xf32>
    %14 = tpu.matmul %12, %13, %cst_12 {dimension_numbers = #tpu.dot_dimension_numbers<[1], [0], [0], [1], [0, 0, 1, 1], [], []>} : vector<8x128xf32>, vector<128x128xf32>, vector<8x128xf32> -> vector<8x128xf32>
    %c0_13 = arith.constant 0 : index
    %c0_14 = arith.constant 0 : index
    %15 = vector.load %arg7[%c0_13, %c0_14] : memref<1x128xf32, #tpu.memory_space<vmem>>, vector<1x128xf32>
    %16 = vector.broadcast %15 : vector<1x128xf32> to vector<8x128xf32>
    %17 = arith.addf %14, %16 : vector<8x128xf32>
    %18 = math.tanh %17 : vector<8x128xf32>
    %c0_15 = arith.constant 0 : index
    %c0_16 = arith.constant 0 : index
    %19 = vector.load %arg8[%c0_15, %c0_16] : memref<128x8xf32, #tpu.memory_space<vmem>>, vector<128x8xf32>
    %cst_17 = arith.constant dense<0.000000e+00> : vector<8x8xf32>
    %20 = tpu.matmul %18, %19, %cst_17 {dimension_numbers = #tpu.dot_dimension_numbers<[1], [0], [0], [1], [0, 0, 1, 1], [], []>} : vector<8x128xf32>, vector<128x8xf32>, vector<8x8xf32> -> vector<8x8xf32>
    %c0_18 = arith.constant 0 : index
    %c0_19 = arith.constant 0 : index
    %21 = vector.load %arg9[%c0_18, %c0_19] : memref<1x8xf32, #tpu.memory_space<vmem>>, vector<1x8xf32>
    %22 = vector.broadcast %21 : vector<1x8xf32> to vector<8x8xf32>
    %23 = arith.addf %20, %22 : vector<8x8xf32>
    %24 = math.tanh %23 : vector<8x8xf32>
    %c0_20 = arith.constant 0 : index
    %c0_21 = arith.constant 0 : index
    %25 = vector.load %arg10[%c0_20, %c0_21] : memref<8x8xf32, #tpu.memory_space<vmem>>, vector<8x8xf32>
    tpu.vector_store %arg10[%c0_20, %c0_21], %24 {strides = array<i32>} : memref<8x8xf32, #tpu.memory_space<vmem>>, vector<8x8xf32>,
    return
  }
  func.func @transform_0(%arg0: i32) -> (i32, i32) {
    %c0_i32 = arith.constant 0 : i32
    %c0_i32_0 = arith.constant 0 : i32
    return %arg0, %c0_i32 : i32, i32
  }
  func.func @transform_1(%arg0: i32) -> (i32, i32) {
    %c0_i32 = arith.constant 0 : i32
    %c0_i32_0 = arith.constant 0 : i32
    %c0_i32_1 = arith.constant 0 : i32
    return %c0_i32, %c0_i32_0 : i32, i32
  }
  func.func @transform_2(%arg0: i32) -> (i32, i32) {
    %c0_i32 = arith.constant 0 : i32
    %c0_i32_0 = arith.constant 0 : i32
    %c0_i32_1 = arith.constant 0 : i32
    return %c0_i32, %c0_i32_0 : i32, i32
  }
  func.func @transform_3(%arg0: i32) -> (i32, i32) {
    %c0_i32 = arith.constant 0 : i32
    %c0_i32_0 = arith.constant 0 : i32
    %c0_i32_1 = arith.constant 0 : i32
    return %c0_i32, %c0_i32_0 : i32, i32
  }
  func.func @transform_4(%arg0: i32) -> (i32, i32) {
    %c0_i32 = arith.constant 0 : i32
    %c0_i32_0 = arith.constant 0 : i32
    %c0_i32_1 = arith.constant 0 : i32
    return %c0_i32, %c0_i32_0 : i32, i32
  }
  func.func @transform_5(%arg0: i32) -> (i32, i32) {
    %c0_i32 = arith.constant 0 : i32
    %c0_i32_0 = arith.constant 0 : i32
    %c0_i32_1 = arith.constant 0 : i32
    return %c0_i32, %c0_i32_0 : i32, i32
  }
  func.func @transform_6(%arg0: i32) -> (i32, i32) {
    %c0_i32 = arith.constant 0 : i32
    %c0_i32_0 = arith.constant 0 : i32
    %c0_i32_1 = arith.constant 0 : i32
    return %c0_i32, %c0_i32_0 : i32, i32
  }
  func.func @transform_7(%arg0: i32) -> (i32, i32) {
    %c0_i32 = arith.constant 0 : i32
    %c0_i32_0 = arith.constant 0 : i32
    %c0_i32_1 = arith.constant 0 : i32
    return %c0_i32, %c0_i32_0 : i32, i32
  }
  func.func @transform_8(%arg0: i32) -> (i32, i32) {
    %c0_i32 = arith.constant 0 : i32
    %c0_i32_0 = arith.constant 0 : i32
    %c0_i32_1 = arith.constant 0 : i32
    return %c0_i32, %c0_i32_0 : i32, i32
  }
  func.func @transform_9(%arg0: i32) -> (i32, i32) {
    %c0_i32 = arith.constant 0 : i32
    %c0_i32_0 = arith.constant 0 : i32
    return %arg0, %c0_i32 : i32, i32
  }
}

</mosaic_0001>

<llo_original>
// kernel: tpu_custom_call.1
$region0: #{tpu_custom_call.1}
  #allocation0 [shape = 'u32[]', space=smem, size = 0x4, offset = 0x4, fixed_abs, tag = 'smem constant byte address 0x4 - core index']
  #allocation1 [shape = 'u32[144,128]{1,0:T(1,128)}', space=vmem, size = 0x12000, scoped, tag = 'internal scratch']
  %s0 = inlined_call_operand.vmem [shape: f32[8,16], index: 0, kind: input, shape index: {}]
  %s1 = inlined_call_operand.hbm [shape: f32[16,128], index: 1, kind: input, shape index: {}]
  %s2 = inlined_call_operand.vmem [shape: f32[1,128], index: 2, kind: input, shape index: {}]
  %s3 = inlined_call_operand.vmem [shape: f32[128,128], index: 3, kind: input, shape index: {}]
  %s4 = inlined_call_operand.vmem [shape: f32[1,128], index: 4, kind: input, shape index: {}]
  %s5 = inlined_call_operand.hbm [shape: f32[128,128], index: 5, kind: input, shape index: {}]
  %s6 = inlined_call_operand.vmem [shape: f32[1,128], index: 6, kind: input, shape index: {}]
  %s7 = inlined_call_operand.vmem [shape: f32[128,8], index: 7, kind: input, shape index: {}]
  %s8 = inlined_call_operand.vmem [shape: f32[1,8], index: 8, kind: input, shape index: {}]
  %s9 = inlined_call_operand.hbm [shape: f32[8,8], index: 9, kind: output, shape index: {}]
  %s10 = sld [smem:[#allocation0]]
  $region54: #{tpu_custom_call.1} parent=0
    _
  %s12 = ssub.s32 1, %s10
  %s13 = scalar_select 0, %s12, %s10
  $region1: #{tpu_custom_call.1} parent=0
    #allocation2 [shape = 'u8[8192]{0}', space=vmem, size = 0x2000, scoped, tag = 'input window, operand 1, single buffered']
    #allocation3 [shape = 's32[1]{0}', space=sflag, size = 0x4, scoped, tag = 'scoped memory for tpu_custom_call.1']
    #allocation4 [shape = 's32[1]{0}', space=sflag, size = 0x4, scoped, tag = 'scoped memory for tpu_custom_call.1']
    #allocation5 [shape = 'u8[65536]{0}', space=vmem, size = 0x10000, scoped, tag = 'input window, operand 5, single buffered']
    #allocation6 [shape = 's32[1]{0}', space=sflag, size = 0x4, scoped, tag = 'scoped memory for tpu_custom_call.1']
    #allocation7 [shape = 'u8[4096]{0}', space=vmem, size = 0x1000, scoped, tag = 'output window, operand 0, single buffered']
    %14 = vsyncpa [#allocation3], 0
    %15 = vsyncpa [#allocation6], 0
    %16 = vsyncpa [#allocation4], 0
    // Predicated region
    $region2: #{tpu_custom_call.1} parent=1 // pred_check
      _
    $region3: #{tpu_custom_call.1} parent=1 // pred_check_branch
      %18 = sbr.rel (0) target = $region5
    $region4: #{tpu_custom_call.1} parent=1 // pred_region
      _
    $region5: #{tpu_custom_call.1} parent=1 // pred_fallthru
      _
    // Predicated region
    $region6: #{tpu_custom_call.1} parent=1 // pred_check
      _
    $region7: #{tpu_custom_call.1} parent=1 // pred_check_branch
      %20 = sbr.rel (0) target = $region9
    $region8: #{tpu_custom_call.1} parent=1 // pred_region
      %s22 = ssub.s32 256, 256
      %23 = vsyncadd [#allocation3], %s22
      %s24 = sshll.u32 [#allocation2], 4
      %s25 = int_to_ptr.vmem [resolvable:$true] %s24
      %30 = dma.hbm_to_vmem [thread:$0]  %s1, 256, %s25, [#allocation3], 128, 128, 8
    $region9: #{tpu_custom_call.1} parent=1 // pred_fallthru
      _
    // Predicated region
    $region10: #{tpu_custom_call.1} parent=1 // pred_check
      _
    $region11: #{tpu_custom_call.1} parent=1 // pred_check_branch
      %32 = sbr.rel (0) target = $region13
    $region12: #{tpu_custom_call.1} parent=1 // pred_region
      _
    $region13: #{tpu_custom_call.1} parent=1 // pred_fallthru
      _
    // Predicated region
    $region14: #{tpu_custom_call.1} parent=1 // pred_check
      _
    $region15: #{tpu_custom_call.1} parent=1 // pred_check_branch
      %34 = sbr.rel (0) target = $region17
    $region16: #{tpu_custom_call.1} parent=1 // pred_region
      _
    $region17: #{tpu_custom_call.1} parent=1 // pred_fallthru
      _
    // Predicated region
    $region18: #{tpu_custom_call.1} parent=1 // pred_check
      _
    $region19: #{tpu_custom_call.1} parent=1 // pred_check_branch
      %36 = sbr.rel (0) target = $region21
    $region20: #{tpu_custom_call.1} parent=1 // pred_region
      _
    $region21: #{tpu_custom_call.1} parent=1 // pred_fallthru
      _
    // Predicated region
    $region22: #{tpu_custom_call.1} parent=1 // pred_check
      _
    $region23: #{tpu_custom_call.1} parent=1 // pred_check_branch
      %38 = sbr.rel (0) target = $region25
    $region24: #{tpu_custom_call.1} parent=1 // pred_region
      %s40 = ssub.s32 2048, 2048
      %41 = vsyncadd [#allocation6], %s40
      %s42 = sshll.u32 [#allocation5], 4
      %s43 = int_to_ptr.vmem [resolvable:$true] %s42
      %48 = dma.hbm_to_vmem [thread:$0]  %s5, 2048, %s43, [#allocation6], 128, 128, 8
    $region25: #{tpu_custom_call.1} parent=1 // pred_fallthru
      _
    // Predicated region
    $region26: #{tpu_custom_call.1} parent=1 // pred_check
      _
    $region27: #{tpu_custom_call.1} parent=1 // pred_check_branch
      %50 = sbr.rel (0) target = $region29
    $region28: #{tpu_custom_call.1} parent=1 // pred_region
      _
    $region29: #{tpu_custom_call.1} parent=1 // pred_fallthru
      _
    // Predicated region
    $region30: #{tpu_custom_call.1} parent=1 // pred_check
      _
    $region31: #{tpu_custom_call.1} parent=1 // pred_check_branch
      %52 = sbr.rel (0) target = $region33
    $region32: #{tpu_custom_call.1} parent=1 // pred_region
      _
    $region33: #{tpu_custom_call.1} parent=1 // pred_fallthru
      _
    // Predicated region
    $region34: #{tpu_custom_call.1} parent=1 // pred_check
      _
    $region35: #{tpu_custom_call.1} parent=1 // pred_check_branch
      %54 = sbr.rel (0) target = $region37
    $region36: #{tpu_custom_call.1} parent=1 // pred_region
      _
    $region37: #{tpu_custom_call.1} parent=1 // pred_fallthru
      _
    // Predicated region
    $region38: #{tpu_custom_call.1} parent=1 // pred_check
      _
    $region39: #{tpu_custom_call.1} parent=1 // pred_check_branch
      %56 = sbr.rel (0) target = $region41
    $region40: #{tpu_custom_call.1} parent=1 // pred_region
      %57 = dma.done [#allocation3], 256
    $region41: #{tpu_custom_call.1} parent=1 // pred_fallthru
      _
    // Predicated region
    $region42: #{tpu_custom_call.1} parent=1 // pred_check
      _
    $region43: #{tpu_custom_call.1} parent=1 // pred_check_branch
      %59 = sbr.rel (0) target = $region45
    $region44: #{tpu_custom_call.1} parent=1 // pred_region
      %60 = dma.done [#allocation6], 2048
    $region45: #{tpu_custom_call.1} parent=1 // pred_fallthru
      _
    %v61 = vld [vmem:[%s0] sm:$0xff]
    %v62 = vld [vmem:[#allocation2] sm:$0xff]
    %v63 = vld [vmem:[#allocation2 + $0x8] sm:$0xff]
    %v64 = vld [vmem:[%s2] sm:$0x1]
    %v66 = vlaneseq
    %v67 = vshrl.u32 %v66, 7
    %v68 = vsub.s32 0, %v67
    %v69 = vrot.slane %v64, %v68
    %vm71 = vcmask 130048
    %v73 = vsel %vm71, %v61, 0
    %75 = vmatprep.subr.mxu0 0.0
    %76 = vmatpush1.msra.mxu0 0.0
    %77 = vmatprep.subr.mxu0 0.0
    %78 = vmatpush1.msra.mxu0 0.0
    %79 = vmatprep.subr.mxu0 0.0
    %80 = vmatpush1.msra.mxu0 0.0
    %81 = vmatprep.subr.mxu0 0.0
    %82 = vmatpush1.msra.mxu0 0.0
    %83 = vmatprep.subr.mxu0 0.0
    %84 = vmatpush1.msra.mxu0 0.0
    %85 = vmatprep.subr.mxu0 0.0
    %86 = vmatpush1.msra.mxu0 0.0
    %87 = vmatprep.subr.mxu0 0.0
    %88 = vmatpush1.msra.mxu0 0.0
    %89 = vmatprep.subr.mxu0 0.0
    %90 = vmatpush1.msra.mxu0 0.0
    %91 = vmatprep.subr.mxu0 0.0
    %92 = vmatpush1.msra.mxu0 0.0
    %93 = vmatprep.subr.mxu0 0.0
    %94 = vmatpush1.msra.mxu0 0.0
    %95 = vmatprep.subr.mxu0 0.0
    %96 = vmatpush1.msra.mxu0 0.0
    %97 = vmatprep.subr.mxu0 0.0
    %98 = vmatpush1.msra.mxu0 0.0
    %99 = vmatprep.subr.mxu0 0.0
    %100 = vmatpush1.msra.mxu0 0.0
    %101 = vmatprep.subr.mxu0 0.0
    %102 = vmatpush1.msra.mxu0 0.0
    %103 = vmatprep.subr.mxu0 0.0
    %104 = vmatpush1.msra.mxu0 %v63
    %105 = vmatprep.subr.mxu0 0.0
    %106 = vmatpush1.msra.mxu0 %v62
    %107 = vmatprep.subr.mxu0 0.0
    %108 = vmatpush2.msra.mxu0 0.0
    %109 = vmatprep.subr.mxu0 0.0
    %110 = vmatpush2.msra.mxu0 0.0
    %111 = vmatprep.subr.mxu0 0.0
    %112 = vmatpush2.msra.mxu0 0.0
    %113 = vmatprep.subr.mxu0 0.0
    %114 = vmatpush2.msra.mxu0 0.0
    %115 = vmatprep.subr.mxu0 0.0
    %116 = vmatpush2.msra.mxu0 0.0
    %117 = vmatprep.subr.mxu0 0.0
    %118 = vmatpush2.msra.mxu0 0.0
    %119 = vmatprep.subr.mxu0 0.0
    %120 = vmatpush2.msra.mxu0 0.0
    %121 = vmatprep.subr.mxu0 0.0
    %122 = vmatpush2.msra.mxu0 0.0
    %123 = vmatprep.subr.mxu0 0.0
    %124 = vmatpush2.msra.mxu0 0.0
    %125 = vmatprep.subr.mxu0 0.0
    %126 = vmatpush2.msra.mxu0 0.0
    %127 = vmatprep.subr.mxu0 0.0
    %128 = vmatpush2.msra.mxu0 0.0
    %129 = vmatprep.subr.mxu0 0.0
    %130 = vmatpush2.msra.mxu0 0.0
    %131 = vmatprep.subr.mxu0 0.0
    %132 = vmatpush2.msra.mxu0 0.0
    %133 = vmatprep.subr.mxu0 0.0
    %134 = vmatpush2.msra.mxu0 0.0
    %135 = vmatprep.subr.mxu0 0.0
    %136 = vmatpush2.msra.mxu0 0.0
    %137 = vmatprep.subr.mxu0 0.0
    %138 = vmatpush2.msra.mxu0 0.0
    %139 = vmatprep.mubr.f32.mxu0 0.0
    %140 = vmatmul.mubr.f32.gmra.mxu0 %v73
    %v141 = vpop.f32.mrf.mxu0
    %v142 = vadd.f32 %v69, %v141
    %v143 = vpop.f32.mrf.mxu0
    %144 = vdwg.mxu0
    %v145 = vtanh.pop %v142
    %v146 = vld [vmem:[%s3] sm:$0xff]
    %v147 = vld [vmem:[%s3 + $0x8] sm:$0xff]
    %v148 = vld [vmem:[%s3 + $0x10] sm:$0xff]
    %v149 = vld [vmem:[%s3 + $0x18] sm:$0xff]
    %v150 = vld [vmem:[%s3 + $0x20] sm:$0xff]
    %v151 = vld [vmem:[%s3 + $0x28] sm:$0xff]
    %v152 = vld [vmem:[%s3 + $0x30] sm:$0xff]
    %v153 = vld [vmem:[%s3 + $0x38] sm:$0xff]
    %v154 = vld [vmem:[%s3 + $0x40] sm:$0xff]
    %v155 = vld [vmem:[%s3 + $0x48] sm:$0xff]
    %v156 = vld [vmem:[%s3 + $0x50] sm:$0xff]
    %v157 = vld [vmem:[%s3 + $0x58] sm:$0xff]
    %v158 = vld [vmem:[%s3 + $0x60] sm:$0xff]
    %v159 = vld [vmem:[%s3 + $0x68] sm:$0xff]
    %v160 = vld [vmem:[%s3 + $0x70] sm:$0xff]
    %v161 = vld [vmem:[%s3 + $0x78] sm:$0xff]
    %v162 = vld [vmem:[%s4] sm:$0x1]
    %v164 = vlaneseq
    %v165 = vshrl.u32 %v164, 7
    %v166 = vsub.s32 0, %v165
    %v167 = vrot.slane %v162, %v166
    %169 = vmatprep.subr.mxu0 0.0
    %170 = vmatpush1.msra.mxu0 %v161
    %171 = vmatprep.subr.mxu0 0.0
    %172 = vmatpush1.msra.mxu0 %v160
    %173 = vmatprep.subr.mxu0 0.0
    %174 = vmatpush1.msra.mxu0 %v159
    %175 = vmatprep.subr.mxu0 0.0
    %176 = vmatpush1.msra.mxu0 %v158
    %177 = vmatprep.subr.mxu0 0.0
    %178 = vmatpush1.msra.mxu0 %v157
    %179 = vmatprep.subr.mxu0 0.0
    %180 = vmatpush1.msra.mxu0 %v156
    %181 = vmatprep.subr.mxu0 0.0
    %182 = vmatpush1.msra.mxu0 %v155
    %183 = vmatprep.subr.mxu0 0.0
    %184 = vmatpush1.msra.mxu0 %v154
    %185 = vmatprep.subr.mxu0 0.0
    %186 = vmatpush1.msra.mxu0 %v153
    %187 = vmatprep.subr.mxu0 0.0
    %188 = vmatpush1.msra.mxu0 %v152
    %189 = vmatprep.subr.mxu0 0.0
    %190 = vmatpush1.msra.mxu0 %v151
    %191 = vmatprep.subr.mxu0 0.0
    %192 = vmatpush1.msra.mxu0 %v150
    %193 = vmatprep.subr.mxu0 0.0
    %194 = vmatpush1.msra.mxu0 %v149
    %195 = vmatprep.subr.mxu0 0.0
    %196 = vmatpush1.msra.mxu0 %v148
    %197 = vmatprep.subr.mxu0 0.0
    %198 = vmatpush1.msra.mxu0 %v147
    %199 = vmatprep.subr.mxu0 0.0
    %200 = vmatpush1.msra.mxu0 %v146
    %201 = vmatprep.subr.mxu0 0.0
    %202 = vmatpush2.msra.mxu0 0.0
    %203 = vmatprep.subr.mxu0 0.0
    %204 = vmatpush2.msra.mxu0 0.0
    %205 = vmatprep.subr.mxu0 0.0
    %206 = vmatpush2.msra.mxu0 0.0
    %207 = vmatprep.subr.mxu0 0.0
    %208 = vmatpush2.msra.mxu0 0.0
    %209 = vmatprep.subr.mxu0 0.0
    %210 = vmatpush2.msra.mxu0 0.0
    %211 = vmatprep.subr.mxu0 0.0
    %212 = vmatpush2.msra.mxu0 0.0
    %213 = vmatprep.subr.mxu0 0.0
    %214 = vmatpush2.msra.mxu0 0.0
    %215 = vmatprep.subr.mxu0 0.0
    %216 = vmatpush2.msra.mxu0 0.0
    %217 = vmatprep.subr.mxu0 0.0
    %218 = vmatpush2.msra.mxu0 0.0
    %219 = vmatprep.subr.mxu0 0.0
    %220 = vmatpush2.msra.mxu0 0.0
    %221 = vmatprep.subr.mxu0 0.0
    %222 = vmatpush2.msra.mxu0 0.0
    %223 = vmatprep.subr.mxu0 0.0
    %224 = vmatpush2.msra.mxu0 0.0
    %225 = vmatprep.subr.mxu0 0.0
    %226 = vmatpush2.msra.mxu0 0.0
    %227 = vmatprep.subr.mxu0 0.0
    %228 = vmatpush2.msra.mxu0 0.0
    %229 = vmatprep.subr.mxu0 0.0
    %230 = vmatpush2.msra.mxu0 0.0
    %231 = vmatprep.subr.mxu0 0.0
    %232 = vmatpush2.msra.mxu0 0.0
    %233 = vmatprep.mubr.f32.mxu0 0.0
    %234 = vmatmul.mubr.f32.gmra.mxu0 %v145
    %v235 = vpop.f32.mrf.mxu0
    %v236 = vadd.f32 %v167, %v235
    %v237 = vpop.f32.mrf.mxu0
    %238 = vdwg.mxu0
    %v239 = vtanh.pop %v236
    %v240 = vld [vmem:[#allocation5] sm:$0xff]
    %v241 = vld [vmem:[#allocation5 + $0x8] sm:$0xff]
    %v242 = vld [vmem:[#allocation5 + $0x10] sm:$0xff]
    %v243 = vld [vmem:[#allocation5 + $0x18] sm:$0xff]
    %v244 = vld [vmem:[#allocation5 + $0x20] sm:$0xff]
    %v245 = vld [vmem:[#allocation5 + $0x28] sm:$0xff]
    %v246 = vld [vmem:[#allocation5 + $0x30] sm:$0xff]
    %v247 = vld [vmem:[#allocation5 + $0x38] sm:$0xff]
    %v248 = vld [vmem:[#allocation5 + $0x40] sm:$0xff]
    %v249 = vld [vmem:[#allocation5 + $0x48] sm:$0xff]
    %v250 = vld [vmem:[#allocation5 + $0x50] sm:$0xff]
    %v251 = vld [vmem:[#allocation5 + $0x58] sm:$0xff]
    %v252 = vld [vmem:[#allocation5 + $0x60] sm:$0xff]
    %v253 = vld [vmem:[#allocation5 + $0x68] sm:$0xff]
    %v254 = vld [vmem:[#allocation5 + $0x70] sm:$0xff]
    %v255 = vld [vmem:[#allocation5 + $0x78] sm:$0xff]
    %v256 = vld [vmem:[%s6] sm:$0x1]
    %v258 = vlaneseq
    %v259 = vshrl.u32 %v258, 7
    %v260 = vsub.s32 0, %v259
    %v261 = vrot.slane %v256, %v260
    %263 = vmatprep.subr.mxu0 0.0
    %264 = vmatpush1.msra.mxu0 %v255
    %265 = vmatprep.subr.mxu0 0.0
    %266 = vmatpush1.msra.mxu0 %v254
    %267 = vmatprep.subr.mxu0 0.0
    %268 = vmatpush1.msra.mxu0 %v253
    %269 = vmatprep.subr.mxu0 0.0
    %270 = vmatpush1.msra.mxu0 %v252
    %271 = vmatprep.subr.mxu0 0.0
    %272 = vmatpush1.msra.mxu0 %v251
    %273 = vmatprep.subr.mxu0 0.0
    %274 = vmatpush1.msra.mxu0 %v250
    %275 = vmatprep.subr.mxu0 0.0
    %276 = vmatpush1.msra.mxu0 %v249
    %277 = vmatprep.subr.mxu0 0.0
    %278 = vmatpush1.msra.mxu0 %v248
    %279 = vmatprep.subr.mxu0 0.0
    %280 = vmatpush1.msra.mxu0 %v247
    %281 = vmatprep.subr.mxu0 0.0
    %282 = vmatpush1.msra.mxu0 %v246
    %283 = vmatprep.subr.mxu0 0.0
    %284 = vmatpush1.msra.mxu0 %v245
    %285 = vmatprep.subr.mxu0 0.0
    %286 = vmatpush1.msra.mxu0 %v244
    %287 = vmatprep.subr.mxu0 0.0
    %288 = vmatpush1.msra.mxu0 %v243
    %289 = vmatprep.subr.mxu0 0.0
    %290 = vmatpush1.msra.mxu0 %v242
    %291 = vmatprep.subr.mxu0 0.0
    %292 = vmatpush1.msra.mxu0 %v241
    %293 = vmatprep.subr.mxu0 0.0
    %294 = vmatpush1.msra.mxu0 %v240
    %295 = vmatprep.subr.mxu0 0.0
    %296 = vmatpush2.msra.mxu0 0.0
    %297 = vmatprep.subr.mxu0 0.0
    %298 = vmatpush2.msra.mxu0 0.0
    %299 = vmatprep.subr.mxu0 0.0
    %300 = vmatpush2.msra.mxu0 0.0
    %301 = vmatprep.subr.mxu0 0.0
    %302 = vmatpush2.msra.mxu0 0.0
    %303 = vmatprep.subr.mxu0 0.0
    %304 = vmatpush2.msra.mxu0 0.0
    %305 = vmatprep.subr.mxu0 0.0
    %306 = vmatpush2.msra.mxu0 0.0
    %307 = vmatprep.subr.mxu0 0.0
    %308 = vmatpush2.msra.mxu0 0.0
    %309 = vmatprep.subr.mxu0 0.0
    %310 = vmatpush2.msra.mxu0 0.0
    %311 = vmatprep.subr.mxu0 0.0
    %312 = vmatpush2.msra.mxu0 0.0
    %313 = vmatprep.subr.mxu0 0.0
    %314 = vmatpush2.msra.mxu0 0.0
    %315 = vmatprep.subr.mxu0 0.0
    %316 = vmatpush2.msra.mxu0 0.0
    %317 = vmatprep.subr.mxu0 0.0
    %318 = vmatpush2.msra.mxu0 0.0
    %319 = vmatprep.subr.mxu0 0.0
    %320 = vmatpush2.msra.mxu0 0.0
    %321 = vmatprep.subr.mxu0 0.0
    %322 = vmatpush2.msra.mxu0 0.0
    %323 = vmatprep.subr.mxu0 0.0
    %324 = vmatpush2.msra.mxu0 0.0
    %325 = vmatprep.subr.mxu0 0.0
    %326 = vmatpush2.msra.mxu0 0.0
    %327 = vmatprep.mubr.f32.mxu0 0.0
    %328 = vmatmul.mubr.f32.gmra.mxu0 %v239
    %v329 = vpop.f32.mrf.mxu0
    %v330 = vadd.f32 %v261, %v329
    %v331 = vpop.f32.mrf.mxu0
    %332 = vdwg.mxu0
    %v333 = vtanh.pop %v330
    %v334 = vld [vmem:[%s7] sm:$0xff]
    %v335 = vld [vmem:[%s7 + $0x8] sm:$0xff]
    %v336 = vld [vmem:[%s7 + $0x10] sm:$0xff]
    %v337 = vld [vmem:[%s7 + $0x18] sm:$0xff]
    %v338 = vld [vmem:[%s7 + $0x20] sm:$0xff]
    %v339 = vld [vmem:[%s7 + $0x28] sm:$0xff]
    %v340 = vld [vmem:[%s7 + $0x30] sm:$0xff]
    %v341 = vld [vmem:[%s7 + $0x38] sm:$0xff]
    %v342 = vld [vmem:[%s7 + $0x40] sm:$0xff]
    %v343 = vld [vmem:[%s7 + $0x48] sm:$0xff]
    %v344 = vld [vmem:[%s7 + $0x50] sm:$0xff]
    %v345 = vld [vmem:[%s7 + $0x58] sm:$0xff]
    %v346 = vld [vmem:[%s7 + $0x60] sm:$0xff]
    %v347 = vld [vmem:[%s7 + $0x68] sm:$0xff]
    %v348 = vld [vmem:[%s7 + $0x70] sm:$0xff]
    %v349 = vld [vmem:[%s7 + $0x78] sm:$0xff]
    %v350 = vld [vmem:[%s8] sm:$0x1]
    %v352 = vlaneseq
    %v353 = vshrl.u32 %v352, 7
    %v354 = vsub.s32 0, %v353
    %v355 = vrot.slane %v350, %v354
    %357 = vmatprep.subr.mxu0 0.0
    %358 = vmatpush1.msra.mxu0 %v349
    %359 = vmatprep.subr.mxu0 0.0
    %360 = vmatpush1.msra.mxu0 %v348
    %361 = vmatprep.subr.mxu0 0.0
    %362 = vmatpush1.msra.mxu0 %v347
    %363 = vmatprep.subr.mxu0 0.0
    %364 = vmatpush1.msra.mxu0 %v346
    %365 = vmatprep.subr.mxu0 0.0
    %366 = vmatpush1.msra.mxu0 %v345
    %367 = vmatprep.subr.mxu0 0.0
    %368 = vmatpush1.msra.mxu0 %v344
    %369 = vmatprep.subr.mxu0 0.0
    %370 = vmatpush1.msra.mxu0 %v343
    %371 = vmatprep.subr.mxu0 0.0
    %372 = vmatpush1.msra.mxu0 %v342
    %373 = vmatprep.subr.mxu0 0.0
    %374 = vmatpush1.msra.mxu0 %v341
    %375 = vmatprep.subr.mxu0 0.0
    %376 = vmatpush1.msra.mxu0 %v340
    %377 = vmatprep.subr.mxu0 0.0
    %378 = vmatpush1.msra.mxu0 %v339
    %379 = vmatprep.subr.mxu0 0.0
    %380 = vmatpush1.msra.mxu0 %v338
    %381 = vmatprep.subr.mxu0 0.0
    %382 = vmatpush1.msra.mxu0 %v337
    %383 = vmatprep.subr.mxu0 0.0
    %384 = vmatpush1.msra.mxu0 %v336
    %385 = vmatprep.subr.mxu0 0.0
    %386 = vmatpush1.msra.mxu0 %v335
    %387 = vmatprep.subr.mxu0 0.0
    %388 = vmatpush1.msra.mxu0 %v334
    %389 = vmatprep.subr.mxu0 0.0
    %390 = vmatpush2.msra.mxu0 0.0
    %391 = vmatprep.subr.mxu0 0.0
    %392 = vmatpush2.msra.mxu0 0.0
    %393 = vmatprep.subr.mxu0 0.0
    %394 = vmatpush2.msra.mxu0 0.0
    %395 = vmatprep.subr.mxu0 0.0
    %396 = vmatpush2.msra.mxu0 0.0
    %397 = vmatprep.subr.mxu0 0.0
    %398 = vmatpush2.msra.mxu0 0.0
    %399 = vmatprep.subr.mxu0 0.0
    %400 = vmatpush2.msra.mxu0 0.0
    %401 = vmatprep.subr.mxu0 0.0
    %402 = vmatpush2.msra.mxu0 0.0
    %403 = vmatprep.subr.mxu0 0.0
    %404 = vmatpush2.msra.mxu0 0.0
    %405 = vmatprep.subr.mxu0 0.0
    %406 = vmatpush2.msra.mxu0 0.0
    %407 = vmatprep.subr.mxu0 0.0
    %408 = vmatpush2.msra.mxu0 0.0
    %409 = vmatprep.subr.mxu0 0.0
    %410 = vmatpush2.msra.mxu0 0.0
    %411 = vmatprep.subr.mxu0 0.0
    %412 = vmatpush2.msra.mxu0 0.0
    %413 = vmatprep.subr.mxu0 0.0
    %414 = vmatpush2.msra.mxu0 0.0
    %415 = vmatprep.subr.mxu0 0.0
    %416 = vmatpush2.msra.mxu0 0.0
    %417 = vmatprep.subr.mxu0 0.0
    %418 = vmatpush2.msra.mxu0 0.0
    %419 = vmatprep.subr.mxu0 0.0
    %420 = vmatpush2.msra.mxu0 0.0
    %421 = vmatprep.mubr.f32.mxu0 0.0
    %422 = vmatmul.mubr.f32.gmra.mxu0 %v333
    %v423 = vpop.f32.mrf.mxu0
    %v424 = vadd.f32 %v355, %v423
    %v425 = vpop.f32.mrf.mxu0
    %426 = vdwg.mxu0
    %v427 = vtanh.pop %v424
    %vm428 = vcmask 64512
    %429 = vst.msk [vmem:[#allocation7] sm:$0xff] %vm428, %v427
    // Predicated region
    $region46: #{tpu_custom_call.1} parent=1 // pred_check
      _
    $region47: #{tpu_custom_call.1} parent=1 // pred_check_branch
      %431 = sbr.rel (0) target = $region49
    $region48: #{tpu_custom_call.1} parent=1 // pred_region
      %s433 = ssub.s32 128, 128
      %434 = vsyncadd [#allocation4], %s433
      %s436 = sshll.u32 [#allocation7], 4
      %s437 = int_to_ptr.vmem [resolvable:$true] %s436
      %439 = dma.vmem_to_hbm [thread:$0]  %s437, 128, %s9, [#allocation4]
    $region49: #{tpu_custom_call.1} parent=1 // pred_fallthru
      _
    // Predicated region
    $region50: #{tpu_custom_call.1} parent=1 // pred_check
      _
    $region51: #{tpu_custom_call.1} parent=1 // pred_check_branch
      %441 = sbr.rel (0) target = $region53
    $region52: #{tpu_custom_call.1} parent=1 // pred_region
      %442 = dma.done [#allocation4], 128
    $region53: #{tpu_custom_call.1} parent=1 // pred_fallthru
      _
    %443 = vsyncpa [#allocation3], 1
    %444 = vsyncpa [#allocation6], 1
    %445 = vsyncpa [#allocation4], 1

</llo_original>
